<compile_context>
chip_gen: v7x
topology: tpu7x:2x2x1
jax: 0.10.0
libtpu: 0.0.40
codegen_flags: <defaults>
</compile_context>

<pallas_src>
import math

import jax
import jax.numpy as jnp
from jax.experimental import pallas as pl
from jax.experimental.pallas import tpu as pltpu


# --------------------------- standalone GAP kernel ----------------------------
def _gap_rows_kernel(x_ref, o_ref):
    # x_ref: (R, HW)   o_ref: (R, 1)
    hw = x_ref.shape[-1]
    s = jnp.sum(x_ref[...].astype(jnp.float32), axis=-1, keepdims=True)
    o_ref[...] = (s * (1.0 / hw)).astype(o_ref.dtype)


def _rows_per_block(rows, hw, itemsize, target_bytes=4 << 20):
    """Pick a sublane-aligned row-block size streaming ~target_bytes per step."""
    rb = max(1, target_bytes // max(1, hw * itemsize))
    if rb >= rows:
        return rows
    rb = max(8, (rb // 8) * 8)
    if rb >= rows:
        return rows
    return rb


def global_avg_pool(x):
    """AdaptiveAvgPool2d((1,1)) + view(N, -1).  x: (N, C, *spatial) -> (N, C)."""
    n, c = x.shape[0], x.shape[1]
    hw = math.prod(x.shape[2:])
    rows = n * c
    x_flat = x.reshape(rows, hw)          # free reshape (row-major layout)
    rb = _rows_per_block(rows, hw, jnp.dtype(x.dtype).itemsize)
    grid = (pl.cdiv(rows, rb),)
    # TODO(synk): for very large H*W (single block >~8 MB) add an "arbitrary"
    # reduction grid axis over HW with an f32 VMEM accumulator so the
    # double-buffered block stays within the 64 MiB VMEM budget on v7x.
    out = pl.pallas_call(
        _gap_rows_kernel,
        out_shape=jax.ShapeDtypeStruct((rows, 1), x.dtype),
        grid_spec=pltpu.PrefetchScalarGridSpec(
            num_scalar_prefetch=0,
            grid=grid,
            in_specs=[pl.BlockSpec((rb, hw), lambda i: (i, 0))],
            out_specs=pl.BlockSpec((rb, 1), lambda i: (i, 0)),
        ),
        compiler_params=pltpu.CompilerParams(
            dimension_semantics=("parallel",)),
    )(x_flat)
    return out.reshape(n, c)


# ------------------- fused tuple path: GAP + GAP + concat + fc ----------------
def _gap_concat_fc_kernel(xa_ref, xb_ref, wt_ref, b_ref,
                          fc_ref, ga_ref, gb_ref):
    # xa_ref: (N, Ca, HWa)  xb_ref: (N, Cb, HWb)
    # wt_ref: (Ca+Cb, OUT)  b_ref: (1, OUT)
    # fc_ref: (N, OUT)      ga_ref: (N, Ca)   gb_ref: (N, Cb)
    hwa = xa_ref.shape[-1]
    hwb = xb_ref.shape[-1]
    ca = ga_ref.shape[-1]

    # GAP with f32 accumulation.
    ga = jnp.sum(xa_ref[...].astype(jnp.float32), axis=-1) * (1.0 / hwa)
    gb = jnp.sum(xb_ref[...].astype(jnp.float32), axis=-1) * (1.0 / hwb)
    ga_ref[...] = ga.astype(ga_ref.dtype)
    gb_ref[...] = gb.astype(gb_ref.dtype)

    # concat + matmul fused as a split matmul over the two channel groups
    # (static ref slices, no data movement; avoids an in-kernel concatenate).
    wa = wt_ref[:ca, :]
    wb = wt_ref[ca:, :]
    acc = jnp.dot(ga.astype(wa.dtype), wa, preferred_element_type=jnp.float32)
    acc = acc + jnp.dot(gb.astype(wb.dtype), wb,
                        preferred_element_type=jnp.float32)
    acc = acc + b_ref[...].astype(jnp.float32)
    fc_ref[...] = acc.astype(fc_ref.dtype)


def gap_concat_fc(xa, xb, w_t, b2):
    """Fused: (GAP(xa), GAP(xb)) -> concat -> Linear.  Returns (fc, ga, gb)."""
    n = xa.shape[0]
    ca, cb = xa.shape[1], xb.shape[1]
    hwa = math.prod(xa.shape[2:])
    hwb = math.prod(xb.shape[2:])
    d_in, d_out = w_t.shape
    assert d_in == ca + cb, f"fc_out expects concat channels == {d_in}"
    xa_f = xa.reshape(n, ca, hwa)
    xb_f = xb.reshape(n, cb, hwb)
    return pl.pallas_call(
        _gap_concat_fc_kernel,
        out_shape=(
            jax.ShapeDtypeStruct((n, d_out), xa.dtype),
            jax.ShapeDtypeStruct((n, ca), xa.dtype),
            jax.ShapeDtypeStruct((n, cb), xb.dtype),
        ),
        grid_spec=pltpu.PrefetchScalarGridSpec(
            num_scalar_prefetch=0,
            grid=(1,),
            in_specs=[
                pl.BlockSpec((n, ca, hwa), lambda i: (0, 0, 0)),
                pl.BlockSpec((n, cb, hwb), lambda i: (0, 0, 0)),
                pl.BlockSpec((d_in, d_out), lambda i: (0, 0)),
                pl.BlockSpec((1, d_out), lambda i: (0, 0)),
            ],
            out_specs=[
                pl.BlockSpec((n, d_out), lambda i: (0, 0)),
                pl.BlockSpec((n, ca), lambda i: (0, 0)),
                pl.BlockSpec((n, cb), lambda i: (0, 0)),
            ],
        ),
        compiler_params=pltpu.CompilerParams(
            dimension_semantics=("arbitrary",)),
    )(xa_f, xb_f, w_t, b2)


# ------------------------------ Module equivalent -----------------------------
class GlobalAveragePooling:
    """JAX/Pallas port of mmpretrain GlobalAveragePooling (dim=2)."""

    def __init__(self, key, dim=2):
        assert dim == 2, "this port implements the default dim=2 (2D GAP)"
        k_w, k_b = jax.random.split(key)
        # nn.Linear(1024, 512): weight (512, 1024), bias (512,).
        # Deterministic uniform init (synthetic weights, not a checkpoint).
        bound = 1.0 / jnp.sqrt(1024.0)
        self.fc_w = jax.random.uniform(
            k_w, (512, 1024), jnp.float32, -bound, bound)   # torch layout
        self.fc_b = jax.random.uniform(
            k_b, (512,), jnp.float32, -bound, bound)
        # One-time parameter layout prep (not per-call):
        self.fc_wT = jnp.asarray(self.fc_w.T)                # (IN, OUT)
        self.fc_b2 = self.fc_b.reshape(1, 512)               # (1, OUT)

    def __call__(self, inputs):
        if isinstance(inputs, tuple):
            # The reference forward only concatenates / returns the first two
            # pooled tensors; this port supports exactly two tuple inputs.
            assert len(inputs) == 2, "tuple path expects exactly 2 inputs"
            fc, ga, gb = gap_concat_fc(inputs[0], inputs[1],
                                       self.fc_wT, self.fc_b2)
            return (fc, ga, gb)
        elif isinstance(inputs, jnp.ndarray):
            return global_avg_pool(inputs)
        else:
            raise TypeError("neck inputs should be tuple or jnp.ndarray")


# ----------------------------------- demo -------------------------------------
if __name__ == "__main__":
    key = jax.random.PRNGKey(0)
    k_mod, k_x, k_a, k_b = jax.random.split(key, 4)

    neck = GlobalAveragePooling(k_mod, dim=2)

    # Single-tensor path: NCHW input (2, 4, 16, 16) -> (2, 4)
    x = jax.random.normal(k_x, (2, 4, 16, 16), jnp.float32)
    out_single = neck(x)
    jax.block_until_ready(out_single)
    assert out_single.shape == (2, 4)
    ref_single = jnp.mean(x, axis=(2, 3))
    assert jnp.allclose(out_single, ref_single, atol=1e-5)

    # Tuple path: channels must sum to 1024 for fc_out (Linear(1024, 512)).
    xa = jax.random.normal(k_a, (2, 512, 4, 4), jnp.float32)
    xb = jax.random.normal(k_b, (2, 512, 2, 2), jnp.float32)
    out_tuple = neck((xa, xb))
    jax.block_until_ready(out_tuple)
    assert out_tuple[0].shape == (2, 512)
    assert out_tuple[1].shape == (2, 512)
    assert out_tuple[2].shape == (2, 512)
    ga = jnp.mean(xa, axis=(2, 3))
    gb = jnp.mean(xb, axis=(2, 3))
    ref_fc = jnp.concatenate((ga, gb), axis=1) @ neck.fc_w.T + neck.fc_b
    assert jnp.allclose(out_tuple[0], ref_fc, atol=1e-4)
    assert jnp.allclose(out_tuple[1], ga, atol=1e-5)
    assert jnp.allclose(out_tuple[2], gb, atol=1e-5)

    print("KERNEL_OK")
</pallas_src>

<mosaic_0001>
module attributes {stable_mosaic.version = 11 : i64} {
  func.func @_gap_rows_kernel(%arg0: i32, %arg1: memref<8x256xf32, #tpu.memory_space<vmem>>, %arg2: memref<8x1xf32, #tpu.memory_space<vmem>>) attributes {dimension_semantics = [#tpu.dimension_semantics<parallel>], iteration_bounds = array<i64: 1>, scalar_prefetch = 0 : i64, scratch_operands = 0 : i64, tpu.core_type = #tpu.core_type<tc>, window_params = [{transform_indices = @transform_0, window_bounds = array<i64: 8, 256>}, {transform_indices = @transform_1, window_bounds = array<i64: 8, 1>}]} {
    %c0 = arith.constant 0 : index
    %c0_0 = arith.constant 0 : index
    %0 = vector.load %arg1[%c0, %c0_0] : memref<8x256xf32, #tpu.memory_space<vmem>>, vector<8x256xf32>
    %cst = arith.constant dense<0.000000e+00> : vector<8xf32>
    %1 = vector.multi_reduction <add>, %0, %cst [1] : vector<8x256xf32> to vector<8xf32>
    %2 = vector.shape_cast %1 : vector<8xf32> to vector<8x1xf32>
    %cst_1 = arith.constant 3.906250e-03 : f32
    %3 = vector.broadcast %cst_1 : f32 to vector<8x1xf32>
    %4 = arith.mulf %2, %3 : vector<8x1xf32>
    %c0_2 = arith.constant 0 : index
    %c0_3 = arith.constant 0 : index
    %5 = vector.load %arg2[%c0_2, %c0_3] : memref<8x1xf32, #tpu.memory_space<vmem>>, vector<8x1xf32>
    tpu.vector_store %arg2[%c0_2, %c0_3], %4 {strides = array<i32>} : memref<8x1xf32, #tpu.memory_space<vmem>>, vector<8x1xf32>,
    return
  }
  func.func @transform_0(%arg0: i32) -> (i32, i32) {
    %c0_i32 = arith.constant 0 : i32
    %c0_i32_0 = arith.constant 0 : i32
    return %arg0, %c0_i32 : i32, i32
  }
  func.func @transform_1(%arg0: i32) -> (i32, i32) {
    %c0_i32 = arith.constant 0 : i32
    %c0_i32_0 = arith.constant 0 : i32
    return %arg0, %c0_i32 : i32, i32
  }
}

</mosaic_0001>

<llo_original>
// kernel: tpu_custom_call.1
$region0: #{tpu_custom_call.1}
  #allocation0 [shape = 'u32[]', space=smem, size = 0x4, offset = 0x4, fixed_abs, tag = 'smem constant byte address 0x4 - core index']
  #allocation1 [shape = 'u32[144,128]{1,0:T(1,128)}', space=vmem, size = 0x12000, scoped, tag = 'internal scratch']
  %s0 = inlined_call_operand.hbm [shape: f32[8,256], index: 0, kind: input, shape index: {}]
  %s1 = inlined_call_operand.vmem [shape: f32[8,1], index: 1, kind: output, shape index: {}]
  %s2 = sld [smem:[#allocation0]]
  $region18: #{tpu_custom_call.1} parent=0
    _
  %s4 = ssub.s32 1, %s2
  %s5 = scalar_select 0, %s4, %s2
  $region1: #{tpu_custom_call.1} parent=0
    #allocation2 [shape = 'u8[8192]{0}', space=vmem, size = 0x2000, scoped, tag = 'input window, operand 0, single buffered']
    #allocation3 [shape = 's32[1]{0}', space=sflag, size = 0x4, scoped, tag = 'scoped memory for tpu_custom_call.1']
    %6 = vsyncpa [#allocation3], 0
    // Predicated region
    $region2: #{tpu_custom_call.1} parent=1 // pred_check
      _
    $region3: #{tpu_custom_call.1} parent=1 // pred_check_branch
      %8 = sbr.rel (0) target = $region5
    $region4: #{tpu_custom_call.1} parent=1 // pred_region
      %s10 = ssub.s32 256, 256
      %11 = vsyncadd [#allocation3], %s10
      %s13 = sshll.u32 [#allocation2], 4
      %s14 = int_to_ptr.vmem [resolvable:$true] %s13
      %16 = dma.hbm_to_vmem [thread:$0]  %s0, 256, %s14, [#allocation3]
    $region5: #{tpu_custom_call.1} parent=1 // pred_fallthru
      _
    // Predicated region
    $region6: #{tpu_custom_call.1} parent=1 // pred_check
      _
    $region7: #{tpu_custom_call.1} parent=1 // pred_check_branch
      %18 = sbr.rel (0) target = $region9
    $region8: #{tpu_custom_call.1} parent=1 // pred_region
      %19 = dma.done [#allocation3], 256
    $region9: #{tpu_custom_call.1} parent=1 // pred_fallthru
      _
    %v20 = vld [vmem:[#allocation2] sm:$0xff]
    %v21 = vld [vmem:[#allocation2 + $0x8] sm:$0xff]
    %v22 = vadd.f32 %v20, %v21
    %23 = vadd.xlane.f32.xlu0 %v22
    %v24 = vpop.xlane.xlu0 %23
    %v25 = vmul.f32 %v24, 0.00390625
    %vm26 = vcmask 7168
    %27 = vst.msk [vmem:[%s1] sm:$0xff] %vm26, %v25
    // Predicated region
    $region10: #{tpu_custom_call.1} parent=1 // pred_check
      _
    $region11: #{tpu_custom_call.1} parent=1 // pred_check_branch
      %29 = sbr.rel (0) target = $region13
    $region12: #{tpu_custom_call.1} parent=1 // pred_region
      _
    $region13: #{tpu_custom_call.1} parent=1 // pred_fallthru
      _
    // Predicated region
    $region14: #{tpu_custom_call.1} parent=1 // pred_check
      _
    $region15: #{tpu_custom_call.1} parent=1 // pred_check_branch
      %31 = sbr.rel (0) target = $region17
    $region16: #{tpu_custom_call.1} parent=1 // pred_region
      _
    $region17: #{tpu_custom_call.1} parent=1 // pred_fallthru
      _
    %32 = vsyncpa [#allocation3], 1

</llo_original>
